<compile_context>
chip_gen: v5e
topology: v5e:2x2
jax: 0.10.0
libtpu: 0.0.40
codegen_flags: <defaults>
</compile_context>

<pallas_src>
import functools

import jax
import jax.numpy as jnp
import numpy as np
from jax.experimental import pallas as pl
from jax.experimental.pallas import tpu as pltpu

_ACTIVATIONS = {
    "tanh": jnp.tanh,
    "relu": lambda v: jnp.maximum(v, 0.0),
    "sigmoid": jax.nn.sigmoid,
}


def _make_kernel(activation):
    act = _ACTIVATIONS[activation]

    def mlp_kernel(x_ref, w1_ref, b1_ref, w2_ref, b2_ref, w3_ref, b3_ref, o_ref):
        wdt = w1_ref.dtype  # MXU operand dtype (f32 or bf16)
        # In-kernel cast of the activation stream (VPU); accumulate in f32.
        x = x_ref[...].astype(wdt)
        h = act(
            jnp.dot(x, w1_ref[...], preferred_element_type=jnp.float32) + b1_ref[...]
        )
        h = act(
            jnp.dot(h.astype(wdt), w2_ref[...], preferred_element_type=jnp.float32)
            + b2_ref[...]
        )
        o_ref[...] = (
            jnp.dot(h.astype(wdt), w3_ref[...], preferred_element_type=jnp.float32)
            + b3_ref[...]
        ).astype(o_ref.dtype)

    return mlp_kernel


def _round_up(n, m):
    return ((n + m - 1) // m) * m


def _pick_tile(B, sublane, *, min_tile=512, max_tile=4096):
    """Batch-tile (rows per grid step).

    Small batch -> single step. Large batch -> biggest tile in
    [min_tile, max_tile] that still gives >= 2 roughly-even grid steps
    (megacore sharding on v7x), amortizing the ~0.35 us/step overhead.
    """
    if B <= min_tile:
        return _round_up(B, sublane)
    tb = min(_round_up(pl.cdiv(B, 2), sublane), max_tile)
    return max(tb, min_tile)


def prepare_params(params, compute_dtype=jnp.float32):
    """One-time weight prep (hoist out of the per-call path).

    params: PyTorch-convention dict: w_i (out, in), b_i (out,).
    Returns transposed (in, out) weights in the MXU operand dtype and 2-D f32
    biases (they add into the f32 accumulator).
    """
    out = {}
    for n in ("1", "2", "3"):
        w = jnp.asarray(params[f"w{n}"])
        b = jnp.asarray(params[f"b{n}"])
        out[f"w{n}t"] = w.T.astype(compute_dtype)
        out[f"b{n}"] = b.reshape(1, -1).astype(jnp.float32)
    return out


def nn_forward(x, prep, *, activation="tanh", min_tile=512, max_tile=4096):
    """Pallas forward pass. `prep` comes from prepare_params (call it once)."""
    B, input_dim = x.shape
    w1t, w2t, w3t = prep["w1t"], prep["w2t"], prep["w3t"]
    b1r, b2r, b3r = prep["b1"], prep["b2"], prep["b3"]
    assert w1t.shape[0] == input_dim
    h1, h2, out_dim = w1t.shape[1], w2t.shape[1], w3t.shape[1]

    # Sublane multiple for the x / output blocks (they stay in x.dtype).
    sublane = 8 * 4 // jnp.dtype(x.dtype).itemsize  # 8 f32, 16 bf16, 32 int8
    tb = _pick_tile(B, sublane, min_tile=min_tile, max_tile=max_tile)
    grid = (pl.cdiv(B, tb),)

    # Advisory cost estimate for XLA's scheduler.
    flops = 2 * B * (input_dim * h1 + h1 * h2 + h2 * out_dim)
    transcendentals = B * (h1 + h2)
    wbytes = w1t.dtype.itemsize * (input_dim * h1 + h1 * h2 + h2 * out_dim)
    bbytes = 4 * (h1 + h2 + out_dim)
    bytes_accessed = (
        x.dtype.itemsize * B * input_dim
        + x.dtype.itemsize * B * out_dim
        + wbytes
        + bbytes
    )

    kernel = _make_kernel(activation)

    return pl.pallas_call(
        kernel,
        out_shape=jax.ShapeDtypeStruct((B, out_dim), x.dtype),
        grid_spec=pltpu.PrefetchScalarGridSpec(
            num_scalar_prefetch=0,
            grid=grid,
            in_specs=[
                pl.BlockSpec((tb, input_dim), lambda i: (i, 0)),   # x tile
                pl.BlockSpec((input_dim, h1), lambda i: (0, 0)),   # W1^T (resident)
                pl.BlockSpec((1, h1), lambda i: (0, 0)),           # b1
                pl.BlockSpec((h1, h2), lambda i: (0, 0)),          # W2^T (resident)
                pl.BlockSpec((1, h2), lambda i: (0, 0)),           # b2
                pl.BlockSpec((h2, out_dim), lambda i: (0, 0)),     # W3^T (resident)
                pl.BlockSpec((1, out_dim), lambda i: (0, 0)),      # b3
            ],
            out_specs=pl.BlockSpec((tb, out_dim), lambda i: (i, 0)),
        ),
        compiler_params=pltpu.CompilerParams(
            dimension_semantics=("parallel",),  # batch axis shards across TCs
        ),
        cost_estimate=pl.CostEstimate(
            flops=flops,
            transcendentals=transcendentals,
            bytes_accessed=bytes_accessed,
        ),
    )(x, w1t, b1r, w2t, b2r, w3t, b3r)


def init_params(key, input_dim, output_dim, hidden_size=(128, 128)):
    """nn.Linear-style init: U(-1/sqrt(fan_in), 1/sqrt(fan_in))."""
    params = {}
    dims = [input_dim, *hidden_size, output_dim]
    for n, (fan_in, fan_out) in zip(("1", "2", "3"), zip(dims[:-1], dims[1:])):
        key, kw, kb = jax.random.split(key, 3)
        bound = 1.0 / np.sqrt(fan_in)
        params[f"w{n}"] = jax.random.uniform(
            kw, (fan_out, fan_in), jnp.float32, -bound, bound
        )
        params[f"b{n}"] = jax.random.uniform(
            kb, (fan_out,), jnp.float32, -bound, bound
        )
    return params


def nn_forward_ref(x, p, activation="tanh"):
    act = _ACTIVATIONS[activation]
    h = act(x @ p["w1"].T + p["b1"])
    h = act(h @ p["w2"].T + p["b2"])
    return h @ p["w3"].T + p["b3"]


if __name__ == "__main__":
    key = jax.random.PRNGKey(0)
    input_dim, output_dim = 32, 16

    kp, kx1, kx2, kx3 = jax.random.split(key, 4)
    params = init_params(kp, input_dim, output_dim, hidden_size=(128, 128))

    # Weight prep happens ONCE (hoisted out of the per-call path).
    prep_f32 = prepare_params(params, compute_dtype=jnp.float32)
    prep_bf16 = prepare_params(params, compute_dtype=jnp.bfloat16)

    # 1) Small correctness check (single grid step), f32 operands.
    x_small = jax.random.normal(kx1, (64, input_dim), jnp.float32)
    out_small = jax.block_until_ready(nn_forward(x_small, prep_f32))
    ref_small = nn_forward_ref(x_small, params)
    np.testing.assert_allclose(
        np.asarray(out_small), np.asarray(ref_small), rtol=1e-5, atol=1e-5
    )

    # 2) Multi-step grid with a padded tail block (B=1100 -> 2 steps of 552).
    x_big = jax.random.normal(kx2, (1100, input_dim), jnp.float32)
    out_big = jax.block_until_ready(nn_forward(x_big, prep_f32))
    ref_big = nn_forward_ref(x_big, params)
    np.testing.assert_allclose(
        np.asarray(out_big), np.asarray(ref_big), rtol=1e-5, atol=1e-5
    )

    # 3) bf16 MXU-operand path (f32 accumulation); looser tolerance for
    #    operand rounding only (no accumulation drift).
    x_mid = jax.random.normal(kx3, (256, input_dim), jnp.float32)
    out_bf16 = jax.block_until_ready(nn_forward(x_mid, prep_bf16))
    ref_mid = nn_forward_ref(x_mid, params)
    np.testing.assert_allclose(
        np.asarray(out_bf16), np.asarray(ref_mid), rtol=2e-2, atol=2e-2
    )

    print("KERNEL_OK")
</pallas_src>

<mosaic_0001>
module attributes {stable_mosaic.version = 11 : i64} {
  func.func @mlp_kernel(%arg0: i32, %arg1: memref<64x32xf32, #tpu.memory_space<vmem>>, %arg2: memref<32x128xf32, #tpu.memory_space<vmem>>, %arg3: memref<1x128xf32, #tpu.memory_space<vmem>>, %arg4: memref<128x128xf32, #tpu.memory_space<vmem>>, %arg5: memref<1x128xf32, #tpu.memory_space<vmem>>, %arg6: memref<128x16xf32, #tpu.memory_space<vmem>>, %arg7: memref<1x16xf32, #tpu.memory_space<vmem>>, %arg8: memref<64x16xf32, #tpu.memory_space<vmem>>) attributes {dimension_semantics = [#tpu.dimension_semantics<parallel>], iteration_bounds = array<i64: 1>, scalar_prefetch = 0 : i64, scratch_operands = 0 : i64, tpu.core_type = #tpu.core_type<tc>, window_params = [{transform_indices = @transform_0, window_bounds = array<i64: 64, 32>}, {pipeline_mode = #tpu.pipeline_mode<synchronous>, transform_indices = @transform_1, window_bounds = array<i64: 32, 128>}, {pipeline_mode = #tpu.pipeline_mode<synchronous>, transform_indices = @transform_2, window_bounds = array<i64: 1, 128>}, {pipeline_mode = #tpu.pipeline_mode<synchronous>, transform_indices = @transform_3, window_bounds = array<i64: 128, 128>}, {pipeline_mode = #tpu.pipeline_mode<synchronous>, transform_indices = @transform_4, window_bounds = array<i64: 1, 128>}, {pipeline_mode = #tpu.pipeline_mode<synchronous>, transform_indices = @transform_5, window_bounds = array<i64: 128, 16>}, {pipeline_mode = #tpu.pipeline_mode<synchronous>, transform_indices = @transform_6, window_bounds = array<i64: 1, 16>}, {transform_indices = @transform_7, window_bounds = array<i64: 64, 16>}]} {
    %c0 = arith.constant 0 : index
    %c0_0 = arith.constant 0 : index
    %0 = vector.load %arg1[%c0, %c0_0] : memref<64x32xf32, #tpu.memory_space<vmem>>, vector<64x32xf32>
    %c0_1 = arith.constant 0 : index
    %c0_2 = arith.constant 0 : index
    %1 = vector.load %arg2[%c0_1, %c0_2] : memref<32x128xf32, #tpu.memory_space<vmem>>, vector<32x128xf32>
    %cst = arith.constant dense<0.000000e+00> : vector<64x128xf32>
    %2 = tpu.matmul %0, %1, %cst {dimension_numbers = #tpu.dot_dimension_numbers<[1], [0], [0], [1], [0, 0, 1, 1], [], []>} : vector<64x32xf32>, vector<32x128xf32>, vector<64x128xf32> -> vector<64x128xf32>
    %c0_3 = arith.constant 0 : index
    %c0_4 = arith.constant 0 : index
    %3 = vector.load %arg3[%c0_3, %c0_4] : memref<1x128xf32, #tpu.memory_space<vmem>>, vector<1x128xf32>
    %4 = vector.broadcast %3 : vector<1x128xf32> to vector<64x128xf32>
    %5 = arith.addf %2, %4 : vector<64x128xf32>
    %6 = math.tanh %5 : vector<64x128xf32>
    %c0_5 = arith.constant 0 : index
    %c0_6 = arith.constant 0 : index
    %7 = vector.load %arg4[%c0_5, %c0_6] : memref<128x128xf32, #tpu.memory_space<vmem>>, vector<128x128xf32>
    %cst_7 = arith.constant dense<0.000000e+00> : vector<64x128xf32>
    %8 = tpu.matmul %6, %7, %cst_7 {dimension_numbers = #tpu.dot_dimension_numbers<[1], [0], [0], [1], [0, 0, 1, 1], [], []>} : vector<64x128xf32>, vector<128x128xf32>, vector<64x128xf32> -> vector<64x128xf32>
    %c0_8 = arith.constant 0 : index
    %c0_9 = arith.constant 0 : index
    %9 = vector.load %arg5[%c0_8, %c0_9] : memref<1x128xf32, #tpu.memory_space<vmem>>, vector<1x128xf32>
    %10 = vector.broadcast %9 : vector<1x128xf32> to vector<64x128xf32>
    %11 = arith.addf %8, %10 : vector<64x128xf32>
    %12 = math.tanh %11 : vector<64x128xf32>
    %c0_10 = arith.constant 0 : index
    %c0_11 = arith.constant 0 : index
    %13 = vector.load %arg6[%c0_10, %c0_11] : memref<128x16xf32, #tpu.memory_space<vmem>>, vector<128x16xf32>
    %cst_12 = arith.constant dense<0.000000e+00> : vector<64x16xf32>
    %14 = tpu.matmul %12, %13, %cst_12 {dimension_numbers = #tpu.dot_dimension_numbers<[1], [0], [0], [1], [0, 0, 1, 1], [], []>} : vector<64x128xf32>, vector<128x16xf32>, vector<64x16xf32> -> vector<64x16xf32>
    %c0_13 = arith.constant 0 : index
    %c0_14 = arith.constant 0 : index
    %15 = vector.load %arg7[%c0_13, %c0_14] : memref<1x16xf32, #tpu.memory_space<vmem>>, vector<1x16xf32>
    %16 = vector.broadcast %15 : vector<1x16xf32> to vector<64x16xf32>
    %17 = arith.addf %14, %16 : vector<64x16xf32>
    %c0_15 = arith.constant 0 : index
    %c0_16 = arith.constant 0 : index
    %18 = vector.load %arg8[%c0_15, %c0_16] : memref<64x16xf32, #tpu.memory_space<vmem>>, vector<64x16xf32>
    tpu.vector_store %arg8[%c0_15, %c0_16], %17 {strides = array<i32>} : memref<64x16xf32, #tpu.memory_space<vmem>>, vector<64x16xf32>,
    return
  }
  func.func @transform_0(%arg0: i32) -> (i32, i32) {
    %c0_i32 = arith.constant 0 : i32
    %c0_i32_0 = arith.constant 0 : i32
    return %arg0, %c0_i32 : i32, i32
  }
  func.func @transform_1(%arg0: i32) -> (i32, i32) {
    %c0_i32 = arith.constant 0 : i32
    %c0_i32_0 = arith.constant 0 : i32
    %c0_i32_1 = arith.constant 0 : i32
    return %c0_i32, %c0_i32_0 : i32, i32
  }
  func.func @transform_2(%arg0: i32) -> (i32, i32) {
    %c0_i32 = arith.constant 0 : i32
    %c0_i32_0 = arith.constant 0 : i32
    %c0_i32_1 = arith.constant 0 : i32
    return %c0_i32, %c0_i32_0 : i32, i32
  }
  func.func @transform_3(%arg0: i32) -> (i32, i32) {
    %c0_i32 = arith.constant 0 : i32
    %c0_i32_0 = arith.constant 0 : i32
    %c0_i32_1 = arith.constant 0 : i32
    return %c0_i32, %c0_i32_0 : i32, i32
  }
  func.func @transform_4(%arg0: i32) -> (i32, i32) {
    %c0_i32 = arith.constant 0 : i32
    %c0_i32_0 = arith.constant 0 : i32
    %c0_i32_1 = arith.constant 0 : i32
    return %c0_i32, %c0_i32_0 : i32, i32
  }
  func.func @transform_5(%arg0: i32) -> (i32, i32) {
    %c0_i32 = arith.constant 0 : i32
    %c0_i32_0 = arith.constant 0 : i32
    %c0_i32_1 = arith.constant 0 : i32
    return %c0_i32, %c0_i32_0 : i32, i32
  }
  func.func @transform_6(%arg0: i32) -> (i32, i32) {
    %c0_i32 = arith.constant 0 : i32
    %c0_i32_0 = arith.constant 0 : i32
    %c0_i32_1 = arith.constant 0 : i32
    return %c0_i32, %c0_i32_0 : i32, i32
  }
  func.func @transform_7(%arg0: i32) -> (i32, i32) {
    %c0_i32 = arith.constant 0 : i32
    %c0_i32_0 = arith.constant 0 : i32
    return %arg0, %c0_i32 : i32, i32
  }
}

</mosaic_0001>

<llo_original>
// kernel: tpu_custom_call.1
$region0: #{tpu_custom_call.1}
  #allocation0 [shape = 'u32[]', space=smem, size = 0x4, offset = 0x4, fixed_abs, tag = 'smem constant byte address 0x4 - core index']
  #allocation1 [shape = 'u32[72,128]{1,0:T(1,128)}', space=vmem, size = 0x9000, scoped, tag = 'internal scratch']
  %s0 = inlined_call_operand.vmem [shape: f32[64,32], index: 0, kind: input, shape index: {}]
  %s1 = inlined_call_operand.vmem [shape: f32[32,128], index: 1, kind: input, shape index: {}]
  %s2 = inlined_call_operand.vmem [shape: f32[1,128], index: 2, kind: input, shape index: {}]
  %s3 = inlined_call_operand.vmem [shape: f32[128,128], index: 3, kind: input, shape index: {}]
  %s4 = inlined_call_operand.vmem [shape: f32[1,128], index: 4, kind: input, shape index: {}]
  %s5 = inlined_call_operand.vmem [shape: f32[128,16], index: 5, kind: input, shape index: {}]
  %s6 = inlined_call_operand.vmem [shape: f32[1,16], index: 6, kind: input, shape index: {}]
  %s7 = inlined_call_operand.vmem [shape: f32[64,16], index: 7, kind: output, shape index: {}]
  %s8 = sld [smem:[#allocation0]]
  $region38: #{tpu_custom_call.1} parent=0
    _
  %s10 = ssub.s32 1, %s8
  %s11 = scalar_select 0, %s10, %s8
  // Predicated region
  $region2: #{tpu_custom_call.1} parent=0 // pred_check
    _
  $region3: #{tpu_custom_call.1} parent=0 // pred_check_branch
    %13 = sbr.rel (0) target = $region5
  $region4: #{tpu_custom_call.1} parent=0 // pred_region
    _
  $region5: #{tpu_custom_call.1} parent=0 // pred_fallthru
    _
  // Predicated region
  $region6: #{tpu_custom_call.1} parent=0 // pred_check
    _
  $region7: #{tpu_custom_call.1} parent=0 // pred_check_branch
    %15 = sbr.rel (0) target = $region9
  $region8: #{tpu_custom_call.1} parent=0 // pred_region
    _
  $region9: #{tpu_custom_call.1} parent=0 // pred_fallthru
    _
  // Predicated region
  $region10: #{tpu_custom_call.1} parent=0 // pred_check
    _
  $region11: #{tpu_custom_call.1} parent=0 // pred_check_branch
    %17 = sbr.rel (0) target = $region13
  $region12: #{tpu_custom_call.1} parent=0 // pred_region
    _
  $region13: #{tpu_custom_call.1} parent=0 // pred_fallthru
    _
  // Predicated region
  $region14: #{tpu_custom_call.1} parent=0 // pred_check
    _
  $region15: #{tpu_custom_call.1} parent=0 // pred_check_branch
    %19 = sbr.rel (0) target = $region17
  $region16: #{tpu_custom_call.1} parent=0 // pred_region
    _
  $region17: #{tpu_custom_call.1} parent=0 // pred_fallthru
    _
  // Predicated region
  $region18: #{tpu_custom_call.1} parent=0 // pred_check
    _
  $region19: #{tpu_custom_call.1} parent=0 // pred_check_branch
    %21 = sbr.rel (0) target = $region21
  $region20: #{tpu_custom_call.1} parent=0 // pred_region
    _
  $region21: #{tpu_custom_call.1} parent=0 // pred_fallthru
    _
  // Predicated region
  $region22: #{tpu_custom_call.1} parent=0 // pred_check
    _
  $region23: #{tpu_custom_call.1} parent=0 // pred_check_branch
    %23 = sbr.rel (0) target = $region25
  $region24: #{tpu_custom_call.1} parent=0 // pred_region
    _
  $region25: #{tpu_custom_call.1} parent=0 // pred_fallthru
    _
  // Predicated region
  $region26: #{tpu_custom_call.1} parent=0 // pred_check
    _
  $region27: #{tpu_custom_call.1} parent=0 // pred_check_branch
    %25 = sbr.rel (0) target = $region29
  $region28: #{tpu_custom_call.1} parent=0 // pred_region
    _
  $region29: #{tpu_custom_call.1} parent=0 // pred_fallthru
    _
  %v26 = vld [vmem:[%s0] sm:$0xff]
  %v27 = vld [vmem:[%s0 + $0x8] sm:$0xff]
  %v28 = vld [vmem:[%s0 + $0x10] sm:$0xff]
  %v29 = vld [vmem:[%s0 + $0x18] sm:$0xff]
  %v30 = vld [vmem:[%s0 + $0x20] sm:$0xff]
  %v31 = vld [vmem:[%s0 + $0x28] sm:$0xff]
  %v32 = vld [vmem:[%s0 + $0x30] sm:$0xff]
  %v33 = vld [vmem:[%s0 + $0x38] sm:$0xff]
  %v34 = vld [vmem:[%s1] sm:$0xff]
  %v35 = vld [vmem:[%s1 + $0x8] sm:$0xff]
  %v36 = vld [vmem:[%s1 + $0x10] sm:$0xff]
  %v37 = vld [vmem:[%s1 + $0x18] sm:$0xff]
  %v38 = vld [vmem:[%s2] sm:$0x1]
  %v40 = vperm.slane %v38, 0
  %vm42 = vcmask 261120
  %v44 = vsel %vm42, %v26, 0
  %v47 = vsel %vm42, %v27, 0
  %v50 = vsel %vm42, %v28, 0
  %v53 = vsel %vm42, %v29, 0
  %v56 = vsel %vm42, %v30, 0
  %v59 = vsel %vm42, %v31, 0
  %v62 = vsel %vm42, %v32, 0
  %v65 = vsel %vm42, %v33, 0
  %67 = vmatpush.msra.mxu0 0.0
  %68 = vmatpush.msra.mxu0 0.0
  %69 = vmatpush.msra.mxu0 0.0
  %70 = vmatpush.msra.mxu0 0.0
  %71 = vmatpush.msra.mxu0 0.0
  %72 = vmatpush.msra.mxu0 0.0
  %73 = vmatpush.msra.mxu0 0.0
  %74 = vmatpush.msra.mxu0 0.0
  %75 = vmatpush.msra.mxu0 0.0
  %76 = vmatpush.msra.mxu0 0.0
  %77 = vmatpush.msra.mxu0 0.0
  %78 = vmatpush.msra.mxu0 0.0
  %79 = vmatpush.msra.mxu0 %v37
  %80 = vmatpush.msra.mxu0 %v36
  %81 = vmatpush.msra.mxu0 %v35
  %82 = vmatpush.msra.mxu0 %v34
  %83 = vmatmul.f32.gmra.mxu0 %v44
  %v84 = vpop.f32.mrf.mxu0
  %v85 = vadd.f32 %v40, %v84
  %86 = vmatmul.f32.gmra.mxu0 %v47
  %v87 = vpop.f32.mrf.mxu0
  %v88 = vadd.f32 %v40, %v87
  %89 = vmatmul.f32.gmra.mxu0 %v50
  %v90 = vpop.f32.mrf.mxu0
  %v91 = vadd.f32 %v40, %v90
  %92 = vmatmul.f32.gmra.mxu0 %v53
  %v93 = vpop.f32.mrf.mxu0
  %v94 = vadd.f32 %v40, %v93
  %95 = vmatmul.f32.gmra.mxu0 %v56
  %v96 = vpop.f32.mrf.mxu0
  %v97 = vadd.f32 %v40, %v96
  %98 = vmatmul.f32.gmra.mxu0 %v59
  %v99 = vpop.f32.mrf.mxu0
  %v100 = vadd.f32 %v40, %v99
  %101 = vmatmul.f32.gmra.mxu0 %v62
  %v102 = vpop.f32.mrf.mxu0
  %v103 = vadd.f32 %v40, %v102
  %104 = vmatmul.f32.gmra.mxu0 %v65
  %v105 = vpop.f32.mrf.mxu0
  %v106 = vadd.f32 %v40, %v105
  %107 = vdwg.mxu0
  %v108 = vtanh.pop %v85
  %v109 = vtanh.pop %v88
  %v110 = vtanh.pop %v91
  %v111 = vtanh.pop %v94
  %v112 = vtanh.pop %v97
  %v113 = vtanh.pop %v100
  %v114 = vtanh.pop %v103
  %v115 = vtanh.pop %v106
  %v116 = vld [vmem:[%s3] sm:$0xff]
  %v117 = vld [vmem:[%s3 + $0x8] sm:$0xff]
  %v118 = vld [vmem:[%s3 + $0x10] sm:$0xff]
  %v119 = vld [vmem:[%s3 + $0x18] sm:$0xff]
  %v120 = vld [vmem:[%s3 + $0x20] sm:$0xff]
  %v121 = vld [vmem:[%s3 + $0x28] sm:$0xff]
  %v122 = vld [vmem:[%s3 + $0x30] sm:$0xff]
  %v123 = vld [vmem:[%s3 + $0x38] sm:$0xff]
  %v124 = vld [vmem:[%s3 + $0x40] sm:$0xff]
  %v125 = vld [vmem:[%s3 + $0x48] sm:$0xff]
  %v126 = vld [vmem:[%s3 + $0x50] sm:$0xff]
  %v127 = vld [vmem:[%s3 + $0x58] sm:$0xff]
  %v128 = vld [vmem:[%s3 + $0x60] sm:$0xff]
  %v129 = vld [vmem:[%s3 + $0x68] sm:$0xff]
  %v130 = vld [vmem:[%s3 + $0x70] sm:$0xff]
  %v131 = vld [vmem:[%s3 + $0x78] sm:$0xff]
  %v132 = vld [vmem:[%s4] sm:$0x1]
  %v134 = vperm.slane %v132, 0
  %136 = vmatpush.msra.mxu0 %v131
  %137 = vmatpush.msra.mxu0 %v130
  %138 = vmatpush.msra.mxu0 %v129
  %139 = vmatpush.msra.mxu0 %v128
  %140 = vmatpush.msra.mxu0 %v127
  %141 = vmatpush.msra.mxu0 %v126
  %142 = vmatpush.msra.mxu0 %v125
  %143 = vmatpush.msra.mxu0 %v124
  %144 = vmatpush.msra.mxu0 %v123
  %145 = vmatpush.msra.mxu0 %v122
  %146 = vmatpush.msra.mxu0 %v121
  %147 = vmatpush.msra.mxu0 %v120
  %148 = vmatpush.msra.mxu0 %v119
  %149 = vmatpush.msra.mxu0 %v118
  %150 = vmatpush.msra.mxu0 %v117
  %151 = vmatpush.msra.mxu0 %v116
  %152 = vmatmul.f32.gmra.mxu0 %v108
  %v153 = vpop.f32.mrf.mxu0
  %v154 = vadd.f32 %v134, %v153
  %155 = vmatmul.f32.gmra.mxu0 %v109
  %v156 = vpop.f32.mrf.mxu0
  %v157 = vadd.f32 %v134, %v156
  %158 = vmatmul.f32.gmra.mxu0 %v110
  %v159 = vpop.f32.mrf.mxu0
  %v160 = vadd.f32 %v134, %v159
  %161 = vmatmul.f32.gmra.mxu0 %v111
  %v162 = vpop.f32.mrf.mxu0
  %v163 = vadd.f32 %v134, %v162
  %164 = vmatmul.f32.gmra.mxu0 %v112
  %v165 = vpop.f32.mrf.mxu0
  %v166 = vadd.f32 %v134, %v165
  %167 = vmatmul.f32.gmra.mxu0 %v113
  %v168 = vpop.f32.mrf.mxu0
  %v169 = vadd.f32 %v134, %v168
  %170 = vmatmul.f32.gmra.mxu0 %v114
  %v171 = vpop.f32.mrf.mxu0
  %v172 = vadd.f32 %v134, %v171
  %173 = vmatmul.f32.gmra.mxu0 %v115
  %v174 = vpop.f32.mrf.mxu0
  %v175 = vadd.f32 %v134, %v174
  %176 = vdwg.mxu0
  %v177 = vtanh.pop %v154
  %v178 = vtanh.pop %v157
  %v179 = vtanh.pop %v160
  %v180 = vtanh.pop %v163
  %v181 = vtanh.pop %v166
  %v182 = vtanh.pop %v169
  %v183 = vtanh.pop %v172
  %v184 = vtanh.pop %v175
  %v185 = vld [vmem:[%s5] sm:$0xff]
  %v186 = vld [vmem:[%s5 + $0x8] sm:$0xff]
  %v187 = vld [vmem:[%s5 + $0x10] sm:$0xff]
  %v188 = vld [vmem:[%s5 + $0x18] sm:$0xff]
  %v189 = vld [vmem:[%s5 + $0x20] sm:$0xff]
  %v190 = vld [vmem:[%s5 + $0x28] sm:$0xff]
  %v191 = vld [vmem:[%s5 + $0x30] sm:$0xff]
  %v192 = vld [vmem:[%s5 + $0x38] sm:$0xff]
  %v193 = vld [vmem:[%s5 + $0x40] sm:$0xff]
  %v194 = vld [vmem:[%s5 + $0x48] sm:$0xff]
  %v195 = vld [vmem:[%s5 + $0x50] sm:$0xff]
  %v196 = vld [vmem:[%s5 + $0x58] sm:$0xff]
  %v197 = vld [vmem:[%s5 + $0x60] sm:$0xff]
  %v198 = vld [vmem:[%s5 + $0x68] sm:$0xff]
  %v199 = vld [vmem:[%s5 + $0x70] sm:$0xff]
  %v200 = vld [vmem:[%s5 + $0x78] sm:$0xff]
  %v201 = vld [vmem:[%s6] sm:$0x1]
  %v203 = vperm.slane %v201, 0
  %205 = vmatpush.msra.mxu0 %v200
  %206 = vmatpush.msra.mxu0 %v199
  %207 = vmatpush.msra.mxu0 %v198
  %208 = vmatpush.msra.mxu0 %v197
  %209 = vmatpush.msra.mxu0 %v196
  %210 = vmatpush.msra.mxu0 %v195
  %211 = vmatpush.msra.mxu0 %v194
  %212 = vmatpush.msra.mxu0 %v193
  %213 = vmatpush.msra.mxu0 %v192
  %214 = vmatpush.msra.mxu0 %v191
  %215 = vmatpush.msra.mxu0 %v190
  %216 = vmatpush.msra.mxu0 %v189
  %217 = vmatpush.msra.mxu0 %v188
  %218 = vmatpush.msra.mxu0 %v187
  %219 = vmatpush.msra.mxu0 %v186
  %220 = vmatpush.msra.mxu0 %v185
  %221 = vmatmul.f32.gmra.mxu0 %v177
  %v222 = vpop.f32.mrf.mxu0
  %v223 = vadd.f32 %v203, %v222
  %224 = vmatmul.f32.gmra.mxu0 %v178
  %v225 = vpop.f32.mrf.mxu0
  %v226 = vadd.f32 %v203, %v225
  %227 = vmatmul.f32.gmra.mxu0 %v179
  %v228 = vpop.f32.mrf.mxu0
  %v229 = vadd.f32 %v203, %v228
  %230 = vmatmul.f32.gmra.mxu0 %v180
  %v231 = vpop.f32.mrf.mxu0
  %v232 = vadd.f32 %v203, %v231
  %233 = vmatmul.f32.gmra.mxu0 %v181
  %v234 = vpop.f32.mrf.mxu0
  %v235 = vadd.f32 %v203, %v234
  %236 = vmatmul.f32.gmra.mxu0 %v182
  %v237 = vpop.f32.mrf.mxu0
  %v238 = vadd.f32 %v203, %v237
  %239 = vmatmul.f32.gmra.mxu0 %v183
  %v240 = vpop.f32.mrf.mxu0
  %v241 = vadd.f32 %v203, %v240
  %242 = vmatmul.f32.gmra.mxu0 %v184
  %v243 = vpop.f32.mrf.mxu0
  %v244 = vadd.f32 %v203, %v243
  %245 = vdwg.mxu0
  %vm246 = vcmask 130048
  %247 = vst.msk [vmem:[%s7] sm:$0xff] %vm246, %v223
  %248 = vst.msk [vmem:[%s7 + $0x8] sm:$0xff] %vm246, %v226
  %249 = vst.msk [vmem:[%s7 + $0x10] sm:$0xff] %vm246, %v229
  %250 = vst.msk [vmem:[%s7 + $0x18] sm:$0xff] %vm246, %v232
  %251 = vst.msk [vmem:[%s7 + $0x20] sm:$0xff] %vm246, %v235
  %252 = vst.msk [vmem:[%s7 + $0x28] sm:$0xff] %vm246, %v238
  %253 = vst.msk [vmem:[%s7 + $0x30] sm:$0xff] %vm246, %v241
  %254 = vst.msk [vmem:[%s7 + $0x38] sm:$0xff] %vm246, %v244
  // Predicated region
  $region30: #{tpu_custom_call.1} parent=0 // pred_check
    _
  $region31: #{tpu_custom_call.1} parent=0 // pred_check_branch
    %256 = sbr.rel (0) target = $region33
  $region32: #{tpu_custom_call.1} parent=0 // pred_region
    _
  $region33: #{tpu_custom_call.1} parent=0 // pred_fallthru
    _
  // Predicated region
  $region34: #{tpu_custom_call.1} parent=0 // pred_check
    _
  $region35: #{tpu_custom_call.1} parent=0 // pred_check_branch
    %258 = sbr.rel (0) target = $region37
  $region36: #{tpu_custom_call.1} parent=0 // pred_region
    _
  $region37: #{tpu_custom_call.1} parent=0 // pred_fallthru
    _

</llo_original>
